<compile_context>
chip_gen: v7x
topology: tpu7x:2x2x1
jax: 0.10.0
libtpu: 0.0.40
codegen_flags: <defaults>
</compile_context>

<pallas_src>
import jax
import jax.numpy as jnp
from jax.experimental import pallas as pl
from jax.experimental.pallas import tpu as pltpu


def _round_up(x: int, m: int) -> int:
    return (x + m - 1) // m * m


def _fused_encode_kernel(x_ref, w_ref, b_ref, o_ref, acc_ref):
    """One (endpoint, M-tile, N-tile) output block; reduction over K-tiles.

    x_ref : (TM, TK)   endpoint input tile
    w_ref : (TK, TN)   fused synapse weight tile (N = S * Hout, lane-dense)
    b_ref : (1,  TN)   fused synapse bias tile
    o_ref : (TM, TN)   output tile (resident across the K grid axis)
    acc   : (TM, TN)   f32 accumulator scratch
    """
    k = pl.program_id(3)

    @pl.when(k == 0)
    def _():
        # Fold the bias into the accumulator init -> no separate epilogue add.
        acc_ref[...] = jnp.broadcast_to(b_ref[...], acc_ref.shape).astype(jnp.float32)

    acc_ref[...] += jnp.dot(
        x_ref[...], w_ref[...], preferred_element_type=jnp.float32
    )

    @pl.when(k == pl.num_programs(3) - 1)
    def _():
        o_ref[...] = acc_ref[...].astype(o_ref.dtype)


def receptor_pool_forward(inputs, weights, biases, *,
                          tm_max=256, tn_max=512, tk_max=512):
    """Synthetic ReceptorPool.forward.

    Args:
      inputs:  f32[E, M, H]          (M = batch * seq)
      weights: f32[E, S, H, Hout]
      biases:  f32[E, S, 1, Hout]

    Returns:
      forward_outputs: f32[E, S, M, Hout]
      forward_codes:   i32[E, S]   (1 == Success)
      forward_times:   f32[E, S]
    """
    E, M, H = inputs.shape
    _, S, _, Hout = weights.shape
    N = S * Hout

    # --- Fuse the synapse axis into the matmul N (lane) dimension. ---
    # weights [E, S, H, Hout] -> [E, H, S*Hout];  biases [E, S, 1, Hout] -> [E, 1, S*Hout]
    w_fused = jnp.transpose(weights, (0, 2, 1, 3)).reshape(E, H, N)
    b_fused = biases.reshape(E, 1, N)

    # --- Tile selection + padding (lane-dense output, (8,128)-legal blocks). ---
    TM = M if M <= tm_max else tm_max
    M_pad = _round_up(M, TM)
    TK = H if H <= tk_max else tk_max
    K_pad = _round_up(H, TK)
    N_pad = _round_up(N, 128)                    # lane-dense output stores
    TN = N_pad if N_pad <= tn_max else tn_max
    N_pad = _round_up(N_pad, TN)

    x_p = inputs
    if (M_pad, K_pad) != (M, H):
        x_p = jnp.pad(inputs, ((0, 0), (0, M_pad - M), (0, K_pad - H)))
    w_p = w_fused
    if (K_pad, N_pad) != (H, N):
        w_p = jnp.pad(w_fused, ((0, 0), (0, K_pad - H), (0, N_pad - N)))
    b_p = b_fused
    if N_pad != N:
        b_p = jnp.pad(b_fused, ((0, 0), (0, 0), (0, N_pad - N)))

    grid = (E, M_pad // TM, N_pad // TN, K_pad // TK)

    flops = 2 * E * M_pad * K_pad * N_pad
    bytes_accessed = 4 * (x_p.size + w_p.size + b_p.size + E * M_pad * N_pad)

    out_padded = pl.pallas_call(
        _fused_encode_kernel,
        out_shape=jax.ShapeDtypeStruct((E, M_pad, N_pad), jnp.float32),
        grid_spec=pltpu.PrefetchScalarGridSpec(
            num_scalar_prefetch=0,
            grid=grid,
            in_specs=[
                pl.BlockSpec((pl.Squeezed(), TM, TK), lambda e, i, j, k: (e, i, k)),
                pl.BlockSpec((pl.Squeezed(), TK, TN), lambda e, i, j, k: (e, k, j)),
                pl.BlockSpec((pl.Squeezed(), 1, TN), lambda e, i, j, k: (e, 0, j)),
            ],
            out_specs=pl.BlockSpec(
                (pl.Squeezed(), TM, TN), lambda e, i, j, k: (e, i, j)
            ),
            scratch_shapes=[pltpu.VMEM((TM, TN), jnp.float32)],
        ),
        compiler_params=pltpu.CompilerParams(
            dimension_semantics=("parallel", "parallel", "parallel", "arbitrary"),
        ),
        cost_estimate=pl.CostEstimate(
            flops=flops, transcendentals=0, bytes_accessed=bytes_accessed
        ),
    )(x_p, w_p, b_p)

    # --- Un-pad and un-fuse: [E, M_pad, N_pad] -> [E, S, M, Hout]. ---
    out = out_padded[:, :M, :N].reshape(E, M, S, Hout)
    forward_outputs = jnp.transpose(out, (0, 2, 1, 3))

    # Non-tensor bookkeeping (return codes / call times) -- plain JAX glue.
    forward_codes = jnp.ones((E, S), dtype=jnp.int32)      # 1 == Success
    forward_times = jnp.zeros((E, S), dtype=jnp.float32)
    return forward_outputs, forward_codes, forward_times


if __name__ == "__main__":
    # Small shapes consistent with the module's semantics:
    #   num_endpoints=2, num_synapses=3, batch=2, seq=8, hidden=32
    E, S = 2, 3
    batch, seq, hidden = 2, 8, 32
    hidden_out = 32
    M = batch * seq

    key = jax.random.PRNGKey(0)
    k_x, k_w, k_b = jax.random.split(key, 3)

    inputs = jax.random.normal(k_x, (E, M, hidden), dtype=jnp.float32)
    weights = (
        jax.random.normal(k_w, (E, S, hidden, hidden_out), dtype=jnp.float32)
        / jnp.sqrt(jnp.float32(hidden))
    )
    biases = jax.random.normal(k_b, (E, S, 1, hidden_out), dtype=jnp.float32) * 0.01

    outs, codes, times = receptor_pool_forward(inputs, weights, biases)
    outs = jax.block_until_ready(outs)
    codes = jax.block_until_ready(codes)
    times = jax.block_until_ready(times)

    # Correctness check against a pure-JAX reference.
    ref = jnp.einsum("emh,esho->esmo", inputs, weights) + biases
    assert outs.shape == (E, S, M, hidden_out)
    assert codes.shape == (E, S) and times.shape == (E, S)
    assert jnp.allclose(outs, ref, atol=1e-4, rtol=1e-4)

    print("KERNEL_OK")
</pallas_src>

<mosaic_0001>
module attributes {stable_mosaic.version = 11 : i64} {
  func.func @_fused_encode_kernel(%arg0: i32, %arg1: i32, %arg2: i32, %arg3: i32, %arg4: memref<1x16x32xf32, #tpu.memory_space<vmem>>, %arg5: memref<1x32x128xf32, #tpu.memory_space<vmem>>, %arg6: memref<1x1x128xf32, #tpu.memory_space<vmem>>, %arg7: memref<1x16x128xf32, #tpu.memory_space<vmem>>, %arg8: memref<16x128xf32, #tpu.memory_space<vmem>>) attributes {dimension_semantics = [#tpu.dimension_semantics<parallel>, #tpu.dimension_semantics<parallel>, #tpu.dimension_semantics<parallel>, #tpu.dimension_semantics<arbitrary>], iteration_bounds = array<i64: 2, 1, 1, 1>, scalar_prefetch = 0 : i64, scratch_operands = 1 : i64, tpu.core_type = #tpu.core_type<tc>, window_params = [{transform_indices = @transform_0, window_bounds = array<i64: 1, 16, 32>}, {transform_indices = @transform_1, window_bounds = array<i64: 1, 32, 128>}, {transform_indices = @transform_2, window_bounds = array<i64: 1, 1, 128>}, {transform_indices = @transform_3, window_bounds = array<i64: 1, 16, 128>}]} {
    %c0_i32 = arith.constant 0 : i32
    %0 = arith.cmpi eq, %arg3, %c0_i32 : i32
    %1 = arith.extui %0 : i1 to i32
    %c0_i32_0 = arith.constant 0 : i32
    %2 = arith.cmpi ne, %1, %c0_i32_0 : i32
    scf.if %2 {
      %c0_12 = arith.constant 0 : index
      %c0_13 = arith.constant 0 : index
      %c0_14 = arith.constant 0 : index
      %14 = vector.load %arg6[%c0_12, %c0_13, %c0_14] : memref<1x1x128xf32, #tpu.memory_space<vmem>>, vector<1x1x128xf32>
      %15 = vector.shape_cast %14 : vector<1x1x128xf32> to vector<1x128xf32>
      %16 = vector.shape_cast %15 : vector<1x128xf32> to vector<1x128xf32>
      %17 = vector.broadcast %16 : vector<1x128xf32> to vector<16x128xf32>
      %c0_15 = arith.constant 0 : index
      %c0_16 = arith.constant 0 : index
      %18 = vector.load %arg8[%c0_15, %c0_16] : memref<16x128xf32, #tpu.memory_space<vmem>>, vector<16x128xf32>
      tpu.vector_store %arg8[%c0_15, %c0_16], %17 {strides = array<i32>} : memref<16x128xf32, #tpu.memory_space<vmem>>, vector<16x128xf32>,
    } else {
    }
    %c0 = arith.constant 0 : index
    %c0_1 = arith.constant 0 : index
    %3 = vector.load %arg8[%c0, %c0_1] : memref<16x128xf32, #tpu.memory_space<vmem>>, vector<16x128xf32>
    %c0_2 = arith.constant 0 : index
    %c0_3 = arith.constant 0 : index
    %c0_4 = arith.constant 0 : index
    %4 = vector.load %arg4[%c0_2, %c0_3, %c0_4] : memref<1x16x32xf32, #tpu.memory_space<vmem>>, vector<1x16x32xf32>
    %5 = vector.shape_cast %4 : vector<1x16x32xf32> to vector<16x32xf32>
    %c0_5 = arith.constant 0 : index
    %c0_6 = arith.constant 0 : index
    %c0_7 = arith.constant 0 : index
    %6 = vector.load %arg5[%c0_5, %c0_6, %c0_7] : memref<1x32x128xf32, #tpu.memory_space<vmem>>, vector<1x32x128xf32>
    %7 = vector.shape_cast %6 : vector<1x32x128xf32> to vector<32x128xf32>
    %cst = arith.constant dense<0.000000e+00> : vector<16x128xf32>
    %8 = tpu.matmul %5, %7, %cst {dimension_numbers = #tpu.dot_dimension_numbers<[1], [0], [0], [1], [0, 0, 1, 1], [], []>} : vector<16x32xf32>, vector<32x128xf32>, vector<16x128xf32> -> vector<16x128xf32>
    %9 = arith.addf %3, %8 : vector<16x128xf32>
    %c0_8 = arith.constant 0 : index
    %c0_9 = arith.constant 0 : index
    %10 = vector.load %arg8[%c0_8, %c0_9] : memref<16x128xf32, #tpu.memory_space<vmem>>, vector<16x128xf32>
    tpu.vector_store %arg8[%c0_8, %c0_9], %9 {strides = array<i32>} : memref<16x128xf32, #tpu.memory_space<vmem>>, vector<16x128xf32>,
    %c0_i32_10 = arith.constant 0 : i32
    %11 = arith.cmpi eq, %arg3, %c0_i32_10 : i32
    %12 = arith.extui %11 : i1 to i32
    %c0_i32_11 = arith.constant 0 : i32
    %13 = arith.cmpi ne, %12, %c0_i32_11 : i32
    scf.if %13 {
      %c0_12 = arith.constant 0 : index
      %c0_13 = arith.constant 0 : index
      %14 = vector.load %arg8[%c0_12, %c0_13] : memref<16x128xf32, #tpu.memory_space<vmem>>, vector<16x128xf32>
      %c0_14 = arith.constant 0 : index
      %c0_15 = arith.constant 0 : index
      %c0_16 = arith.constant 0 : index
      %15 = vector.load %arg7[%c0_14, %c0_15, %c0_16] : memref<1x16x128xf32, #tpu.memory_space<vmem>>, vector<1x16x128xf32>
      %16 = vector.shape_cast %15 : vector<1x16x128xf32> to vector<16x128xf32>
      %17 = vector.shape_cast %14 : vector<16x128xf32> to vector<1x16x128xf32>
      tpu.vector_store %arg7[%c0_14, %c0_15, %c0_16], %17 {strides = array<i32>} : memref<1x16x128xf32, #tpu.memory_space<vmem>>, vector<1x16x128xf32>,
    } else {
    }
    return
  }
  func.func @transform_0(%arg0: i32, %arg1: i32, %arg2: i32, %arg3: i32) -> (i32, i32, i32) {
    %c0_i32 = arith.constant 0 : i32
    return %arg0, %arg1, %arg3 : i32, i32, i32
  }
  func.func @transform_1(%arg0: i32, %arg1: i32, %arg2: i32, %arg3: i32) -> (i32, i32, i32) {
    %c0_i32 = arith.constant 0 : i32
    return %arg0, %arg3, %arg2 : i32, i32, i32
  }
  func.func @transform_2(%arg0: i32, %arg1: i32, %arg2: i32, %arg3: i32) -> (i32, i32, i32) {
    %c0_i32 = arith.constant 0 : i32
    %c0_i32_0 = arith.constant 0 : i32
    return %arg0, %c0_i32, %arg2 : i32, i32, i32
  }
  func.func @transform_3(%arg0: i32, %arg1: i32, %arg2: i32, %arg3: i32) -> (i32, i32, i32) {
    %c0_i32 = arith.constant 0 : i32
    return %arg0, %arg1, %arg2 : i32, i32, i32
  }
}

</mosaic_0001>

<llo_original>
// kernel: tpu_custom_call.1
$region0: #{tpu_custom_call.1}
  #allocation0 [shape = 'u32[]', space=smem, size = 0x4, offset = 0x4, fixed_abs, tag = 'smem constant byte address 0x4 - core index']
  #allocation1 [shape = 'u32[144,128]{1,0:T(1,128)}', space=vmem, size = 0x12000, scoped, tag = 'internal scratch']
  #allocation2 [shape = 'f32[16,128]{1,0:T(8,128)}', space=vmem, size = 0x2000, scoped, tag = 'scratch operand']
  %s0 = inlined_call_operand.hbm [shape: f32[2,16,32], index: 0, kind: input, shape index: {}]
  %s1 = inlined_call_operand.hbm [shape: f32[2,32,128], index: 1, kind: input, shape index: {}]
  %s2 = inlined_call_operand.vmem [shape: f32[2,1,128], index: 2, kind: input, shape index: {}]
  %s3 = inlined_call_operand.hbm [shape: f32[2,16,128], index: 3, kind: output, shape index: {}]
  %s4 = sld [smem:[#allocation0]]
  $region61: #{tpu_custom_call.1} parent=0
    _
  %s6 = ssub.s32 1, %s4
  %s7 = scalar_select 0, %s6, %s4
  $region1: #{tpu_custom_call.1} parent=0
    #allocation3 [shape = 'u8[16384]{0}', space=vmem, size = 0x4000, scoped, tag = 'input window, operand 0']
    #allocation4 [shape = 's32[2]{0}', space=sflag, size = 0x8, scoped, tag = 'scoped memory for tpu_custom_call.1']
    #allocation5 [shape = 's32[2]{0}', space=sflag, size = 0x8, scoped, tag = 'scoped memory for tpu_custom_call.1']
    #allocation6 [shape = 'u8[32768]{0}', space=vmem, size = 0x8000, scoped, tag = 'input window, operand 1']
    #allocation7 [shape = 's32[2]{0}', space=sflag, size = 0x8, scoped, tag = 'scoped memory for tpu_custom_call.1']
    #allocation8 [shape = 'u8[16384]{0}', space=vmem, size = 0x4000, scoped, tag = 'output window, operand 0']
    %8 = vsyncpa [#allocation4], 0
    %s9 = scalar_lea.sflag [#allocation4], 1
    %10 = vsyncpa %s9, 0
    %11 = vsyncpa [#allocation7], 0
    %s12 = scalar_lea.sflag [#allocation7], 1
    %13 = vsyncpa %s12, 0
    %14 = vsyncpa [#allocation5], 0
    %s15 = scalar_lea.sflag [#allocation5], 1
    %16 = vsyncpa %s15, 0
    loop: start=0, step=1, limit=4
    $region2: #{tpu_custom_call.1} parent=1 // loop_pre_header
      _
    $region3: #{tpu_custom_call.1} parent=1 // loop_header
      %s18 = sphi 0, %s22
      %p19 = scmp.ge.s32.totalorder %s18, 4
      %s25 = sphi 0, %s51
      %s26 = sphi 0, %s47
      %s27 = sphi 0, %s43
      %s28 = sphi 0, %s39
      %s29 = sphi 0, %s25
      %s30 = sphi 0, %s26
      %s31 = sphi 0, %s27
      %s32 = sphi 0, %s28
      %s33 = sphi 0, %s29
      %s34 = sphi 0, %s30
      %s35 = sphi 0, %s31
      %s36 = sphi 0, %s32
      %s58 = sphi 0, %s60
      %s61 = sphi 0, %s58
      %s62 = sphi 0, %s61
      %s78 = sphi 0, %s62
      %s88 = sphi 0, %s90
      %s91 = sphi 0, %s88
      %s92 = sphi 0, %s91
      %s108 = sphi 0, %s92
      %s116 = sphi 0, %s118
      %s119 = sphi 0, %s116
      %s120 = sphi 0, %s119
      %s136 = sphi 0, %s120
      %s146 = sphi 0, %s148
      %s149 = sphi 0, %s146
      %s150 = sphi 0, %s149
      %s166 = sphi 0, %s150
    $region4: #{tpu_custom_call.1} parent=1 // loop_header_branch
      %21 = sbr.rel (%p19) target = $region8
    $region5: #{tpu_custom_call.1} parent=1 // loop_body
      %s23 = ssub.s32 %s18, 1
      %s24 = ssub.s32 %s18, 2
      %s37 = sadd.s32 1, %s28
      %p38 = scmp.ge.s32.totalorder %s37, 1
      %s39 = scalar_select %p38, 0, %s37
      %s40 = sadd.s32 1, %s27
      %s41 = scalar_select %p38, %s40, %s27
      %p42 = scmp.ge.s32.totalorder %s41, 1
      %s43 = scalar_select %p42, 0, %s41
      %s44 = sadd.s32 1, %s26
      %s45 = scalar_select %p42, %s44, %s26
      %p46 = scmp.ge.s32.totalorder %s45, 1
      %s47 = scalar_select %p46, 0, %s45
      %s48 = sadd.s32 1, %s25
      %s49 = scalar_select %p46, %s48, %s25
      %p50 = scmp.ge.s32.totalorder %s49, 2
      %s51 = scalar_select %p50, 0, %s49
      %s52 = ssub.s32 %s25, %s51
      %s53 = ssub.s32 %s26, %s47
      %s54 = sor.u32 %s52, %s53
      %s55 = ssub.s32 %s28, %s39
      %s56 = sor.u32 %s54, %s55
      %p57 = scmp.eq.s32.totalorder %s56, 0
      %s59 = sadd.s32 %s58, 1
      %s60 = scalar_select %p57, %s58, %s59
      %p63 = pneg %p57
      %p64 = scmp.eq.s32.totalorder %s18, 1
      %p65 = por %p63, %p64
      %p66 = scmp.ne.s32.totalorder %s58, %s61
      %p67 = scmp.eq.s32.totalorder %s18, 0
      %p68 = por %p66, %p67
      %p69 = scmp.ne.s32.totalorder %s58, %s61
      %p70 = scmp.eq.s32.totalorder %s23, 1
      %p71 = por %p69, %p70
      %p72 = scmp.ne.s32.totalorder %s61, %s62
      %p73 = scmp.eq.s32.totalorder %s23, 0
      %p74 = por %p72, %p73
      %p75 = scmp.ne.s32.totalorder %s61, %s62
      %p76 = scmp.eq.s32.totalorder %s24, 1
      %p77 = por %p75, %p76
      %p79 = scmp.ne.s32.totalorder %s62, %s78
      %p80 = scmp.eq.s32.totalorder %s24, 0
      %p81 = por %p79, %p80
      %s82 = ssub.s32 %s25, %s51
      %s83 = ssub.s32 %s28, %s39
      %s84 = sor.u32 %s82, %s83
      %s85 = ssub.s32 %s27, %s43
      %s86 = sor.u32 %s84, %s85
      %p87 = scmp.eq.s32.totalorder %s86, 0
      %s89 = sadd.s32 %s88, 1
      %s90 = scalar_select %p87, %s88, %s89
      %p93 = pneg %p87
      %p94 = scmp.eq.s32.totalorder %s18, 1
      %p95 = por %p93, %p94
      %p96 = scmp.ne.s32.totalorder %s88, %s91
      %p97 = scmp.eq.s32.totalorder %s18, 0
      %p98 = por %p96, %p97
      %p99 = scmp.ne.s32.totalorder %s88, %s91
      %p100 = scmp.eq.s32.totalorder %s23, 1
      %p101 = por %p99, %p100
      %p102 = scmp.ne.s32.totalorder %s91, %s92
      %p103 = scmp.eq.s32.totalorder %s23, 0
      %p104 = por %p102, %p103
      %p105 = scmp.ne.s32.totalorder %s91, %s92
      %p106 = scmp.eq.s32.totalorder %s24, 1
      %p107 = por %p105, %p106
      %p109 = scmp.ne.s32.totalorder %s92, %s108
      %p110 = scmp.eq.s32.totalorder %s24, 0
      %p111 = por %p109, %p110
      %s112 = ssub.s32 %s25, %s51
      %s113 = ssub.s32 %s27, %s43
      %s114 = sor.u32 %s112, %s113
      %p115 = scmp.eq.s32.totalorder %s114, 0
      %s117 = sadd.s32 %s116, 1
      %s118 = scalar_select %p115, %s116, %s117
      %p121 = pneg %p115
      %p122 = scmp.eq.s32.totalorder %s18, 1
      %p123 = por %p121, %p122
      %p124 = scmp.ne.s32.totalorder %s116, %s119
      %p125 = scmp.eq.s32.totalorder %s18, 0
      %p126 = por %p124, %p125
      %p127 = scmp.ne.s32.totalorder %s116, %s119
      %p128 = scmp.eq.s32.totalorder %s23, 1
      %p129 = por %p127, %p128
      %p130 = scmp.ne.s32.totalorder %s119, %s120
      %p131 = scmp.eq.s32.totalorder %s23, 0
      %p132 = por %p130, %p131
      %p133 = scmp.ne.s32.totalorder %s119, %s120
      %p134 = scmp.eq.s32.totalorder %s24, 1
      %p135 = por %p133, %p134
      %p137 = scmp.ne.s32.totalorder %s120, %s136
      %p138 = scmp.eq.s32.totalorder %s24, 0
      %p139 = por %p137, %p138
      %s140 = ssub.s32 %s25, %s51
      %s141 = ssub.s32 %s26, %s47
      %s142 = sor.u32 %s140, %s141
      %s143 = ssub.s32 %s27, %s43
      %s144 = sor.u32 %s142, %s143
      %p145 = scmp.eq.s32.totalorder %s144, 0
      %s147 = sadd.s32 %s146, 1
      %s148 = scalar_select %p145, %s146, %s147
      %p151 = pneg %p145
      %p152 = scmp.eq.s32.totalorder %s18, 1
      %p153 = por %p151, %p152
      %p154 = scmp.ne.s32.totalorder %s146, %s149
      %p155 = scmp.eq.s32.totalorder %s18, 0
      %p156 = por %p154, %p155
      %p157 = scmp.ne.s32.totalorder %s146, %s149
      %p158 = scmp.eq.s32.totalorder %s23, 1
      %p159 = por %p157, %p158
      %p160 = scmp.ne.s32.totalorder %s149, %s150
      %p161 = scmp.eq.s32.totalorder %s23, 0
      %p162 = por %p160, %p161
      %p163 = scmp.ne.s32.totalorder %s149, %s150
      %p164 = scmp.eq.s32.totalorder %s24, 1
      %p165 = por %p163, %p164
      %p167 = scmp.ne.s32.totalorder %s150, %s166
      %p168 = scmp.eq.s32.totalorder %s24, 0
      %p169 = por %p167, %p168
      %p170 = scmp.le.s32.totalorder 1, %s18
      %p171 = scmp.lt.s32.totalorder %s18, 3
      %p172 = pnand %p170, %p171
      %p173 = pneg %p172
      // Predicated region
      $region9: #{tpu_custom_call.1} parent=5 // pred_check
        _
      $region10: #{tpu_custom_call.1} parent=5 // pred_check_branch
        %175 = sbr.rel (%p172) target = $region12
      $region11: #{tpu_custom_call.1} parent=5 // pred_region
        %s176 = ssub.s32 %s18, 1
      $region12: #{tpu_custom_call.1} parent=5 // pred_fallthru
        _
      %p177 = scmp.lt.s32.totalorder %s18, 2
      // Predicated region
      $region13: #{tpu_custom_call.1} parent=5 // pred_check
        %p178 = pneg %p177
      $region14: #{tpu_custom_call.1} parent=5 // pred_check_branch
        %180 = sbr.rel (%p178) target = $region16
      $region15: #{tpu_custom_call.1} parent=5 // pred_region
        // Predicated region
        $region17: #{tpu_custom_call.1} parent=15 // pred_check
          %p181 = pneg %p68
        $region18: #{tpu_custom_call.1} parent=15 // pred_check_branch
          %183 = sbr.rel (%p181) target = $region20
        $region19: #{tpu_custom_call.1} parent=15 // pred_region
          %s184 = sand.u32 %s58, 1
          %s185 = scalar_lea.sflag [#allocation4], %s184
          %s186 = sand.u32 %s58, 1
          %s187 = smul.addr %s186, 16
          %s188 = scalar_lea.vmem [#allocation3], %s187
          %s189 = smul.u32 2, %s26
          %s191 = ssub.s32 256, 256
          %192 = vsyncadd %s185, %s191
          %s193 = sadd.s32 %s28, %s189
          %s194 = smul.addr %s25, 2
          %s195 = sadd.s32 %s193, %s194
          %s196 = smul.addr %s195, 128
          %s197 = scalar_lea.hbm %s0, %s196
          %s198 = sshll.u32 %s188, 4
          %s199 = int_to_ptr.vmem [resolvable:$true] %s198
          %204 = dma.hbm_to_vmem [thread:$0]  %s197, 256, %s199, %s185, 128, 128, 8
        $region20: #{tpu_custom_call.1} parent=15 // pred_fallthru
          _
        // Predicated region
        $region21: #{tpu_custom_call.1} parent=15 // pred_check
          %p205 = pneg %p98
        $region22: #{tpu_custom_call.1} parent=15 // pred_check_branch
          %207 = sbr.rel (%p205) target = $region24
        $region23: #{tpu_custom_call.1} parent=15 // pred_region
          %s208 = sand.u32 %s88, 1
          %s209 = scalar_lea.sflag [#allocation7], %s208
          %s210 = sand.u32 %s88, 1
          %s211 = smul.addr %s210, 32
          %s212 = scalar_lea.vmem [#allocation6], %s211
          %s213 = smul.u32 4, %s28
          %s215 = ssub.s32 512, 512
          %216 = vsyncadd %s209, %s215
          %s217 = sadd.s32 %s27, %s213
          %s218 = smul.addr %s25, 4
          %s219 = sadd.s32 %s217, %s218
          %s220 = smul.addr %s219, 128
          %s221 = scalar_lea.hbm %s1, %s220
          %s222 = sshll.u32 %s212, 4
          %s223 = int_to_ptr.vmem [resolvable:$true] %s222
          %228 = dma.hbm_to_vmem [thread:$0]  %s221, 512, %s223, %s209, 128, 128, 8
        $region24: #{tpu_custom_call.1} parent=15 // pred_fallthru
          _
        // Predicated region
        $region25: #{tpu_custom_call.1} parent=15 // pred_check
          %p229 = pneg %p126
        $region26: #{tpu_custom_call.1} parent=15 // pred_check_branch
          %231 = sbr.rel (%p229) target = $region28
        $region27: #{tpu_custom_call.1} parent=15 // pred_region
          %p232 = scmp.lt.s32.totalorder %s25, 1
          %s233 = scalar_select %p232, %s25, 1
          %p234 = scmp.lt.s32.totalorder %s27, 0
          %s235 = scalar_select %p234, %s27, 0
          %s236 = sadd.s32 %s235, %s233
          %s237 = scalar_lea.vmem %s2, %s236
        $region28: #{tpu_custom_call.1} parent=15 // pred_fallthru
          _
      $region16: #{tpu_custom_call.1} parent=5 // pred_fallthru
        _
      %p238 = scmp.le.s32.totalorder 1, %s18
      %p239 = scmp.lt.s32.totalorder %s18, 3
      %p240 = pnand %p238, %p239
      %p241 = pneg %p240
      // Predicated region
      $region29: #{tpu_custom_call.1} parent=5 // pred_check
        _
      $region30: #{tpu_custom_call.1} parent=5 // pred_check_branch
        %243 = sbr.rel (%p240) target = $region32
      $region31: #{tpu_custom_call.1} parent=5 // pred_region
        %s244 = ssub.s32 %s18, 1
        %s245 = sand.u32 %s61, 1
        %s246 = scalar_lea.sflag [#allocation4], %s245
        %s247 = sand.u32 %s61, 1
        %s248 = smul.addr %s247, 16
        %s249 = scalar_lea.vmem [#allocation3], %s248
        // Predicated region
        $region33: #{tpu_custom_call.1} parent=31 // pred_check
          %p250 = pneg %p74
        $region34: #{tpu_custom_call.1} parent=31 // pred_check_branch
          %252 = sbr.rel (%p250) target = $region36
        $region35: #{tpu_custom_call.1} parent=31 // pred_region
          %253 = dma.done %s246, 256
        $region36: #{tpu_custom_call.1} parent=31 // pred_fallthru
          _
        %s254 = sand.u32 %s91, 1
        %s255 = scalar_lea.sflag [#allocation7], %s254
        %s256 = sand.u32 %s91, 1
        %s257 = smul.addr %s256, 32
        %s258 = scalar_lea.vmem [#allocation6], %s257
        // Predicated region
        $region37: #{tpu_custom_call.1} parent=31 // pred_check
          %p259 = pneg %p104
        $region38: #{tpu_custom_call.1} parent=31 // pred_check_branch
          %261 = sbr.rel (%p259) target = $region40
        $region39: #{tpu_custom_call.1} parent=31 // pred_region
          %262 = dma.done %s255, 512
        $region40: #{tpu_custom_call.1} parent=31 // pred_fallthru
          _
        %s263 = sand.u32 %s61, 1
        %s264 = scalar_lea.sflag [#allocation4], %s263
        %s265 = sand.u32 %s61, 1
        %s266 = smul.addr %s265, 16
        %s267 = scalar_lea.vmem [#allocation3], %s266
        %p268 = pneg %p74
        %p269 = pneg %p71
        %s270 = sand.u32 %s91, 1
        %s271 = scalar_lea.sflag [#allocation7], %s270
        %s272 = sand.u32 %s91, 1
        %s273 = smul.addr %s272, 32
        %s274 = scalar_lea.vmem [#allocation6], %s273
        %p275 = pneg %p104
        %p276 = pneg %p101
        %p277 = scmp.lt.s32.totalorder %s29, 1
        %s278 = scalar_select %p277, %s29, 1
        %p279 = scmp.lt.s32.totalorder %s31, 0
        %s280 = scalar_select %p279, %s31, 0
        %s281 = sadd.s32 %s280, %s278
        %s282 = scalar_lea.vmem %s2, %s281
        %p283 = pneg %p132
        %p284 = pneg %p129
        %p285 = pneg %p162
        %p286 = pneg %p159
        %s287 = sand.u32 %s149, 1
        %s288 = scalar_lea.sflag [#allocation5], %s287
        %s289 = sand.u32 %s149, 1
        %s290 = smul.addr %s289, 16
        %s291 = scalar_lea.vmem [#allocation8], %s290
        %s292 = smul.u32 2, %s30
        %s293 = smul.u32 4, %s32
        %p294 = scmp.lt.s32.totalorder %s29, 1
        %s295 = scalar_select %p294, %s29, 1
        %p296 = scmp.lt.s32.totalorder %s31, 0
        %s297 = scalar_select %p296, %s31, 0
        %s298 = sadd.s32 %s297, %s295
        %s299 = scalar_lea.vmem %s2, %s298
        %s300 = smul.u32 2, %s30
        %p301 = scmp.eq.s32.totalorder %s32, 0
        // Predicated region
        $region41: #{tpu_custom_call.1} parent=31 // pred_check
          %p302 = pneg %p301
        $region42: #{tpu_custom_call.1} parent=31 // pred_check_branch
          %304 = sbr.rel (%p302) target = $region44
        $region43: #{tpu_custom_call.1} parent=31 // pred_region
          %v305 = vld [vmem:[%s299] sm:$0x1]
          %v307 = vlaneseq
          %v308 = vshrl.u32 %v307, 7
          %v309 = vsub.s32 0, %v308
          %v310 = vrot.slane %v305, %v309
          %312 = vst [vmem:[#allocation2] sm:$0xff] %v310
          %313 = vst [vmem:[#allocation2 + $0x8] sm:$0xff] %v310
        $region44: #{tpu_custom_call.1} parent=31 // pred_fallthru
          _
        %v314 = vld [vmem:[#allocation2] sm:$0xff]
        %v315 = vld [vmem:[#allocation2 + $0x8] sm:$0xff]
        %v316 = vld [vmem:[%s249] sm:$0xff]
        %v317 = vld [vmem:[%s249 + $0x8] sm:$0xff]
        %v318 = vld [vmem:[%s258] sm:$0xff]
        %v319 = vld [vmem:[%s258 + $0x8] sm:$0xff]
        %v320 = vld [vmem:[%s258 + $0x10] sm:$0xff]
        %v321 = vld [vmem:[%s258 + $0x18] sm:$0xff]
        %vm322 = vcmask 261120
        %v324 = vsel %vm322, %v316, 0
        %v327 = vsel %vm322, %v317, 0
        %329 = vmatprep.subr.mxu0 0.0
        %330 = vmatpush1.msra.mxu0 %v318
        %331 = vmatprep.subr.mxu0 0.0
        %332 = vmatpush1.msra.mxu0 %v319
        %333 = vmatprep.subr.mxu0 0.0
        %334 = vmatpush1.msra.mxu0 %v320
        %335 = vmatprep.subr.mxu0 0.0
        %336 = vmatpush1.msra.mxu0 %v321
        %337 = vmatprep.subr.mxu0 0.0
        %338 = vmatpush1.msra.mxu0 0.0
        %339 = vmatprep.subr.mxu0 0.0
        %340 = vmatpush1.msra.mxu0 0.0
        %341 = vmatprep.subr.mxu0 0.0
        %342 = vmatpush1.msra.mxu0 0.0
        %343 = vmatprep.subr.mxu0 0.0
        %344 = vmatpush1.msra.mxu0 0.0
        %345 = vmatprep.subr.mxu0 0.0
        %346 = vmatpush1.msra.mxu0 0.0
        %347 = vmatprep.subr.mxu0 0.0
        %348 = vmatpush1.msra.mxu0 0.0
        %349 = vmatprep.subr.mxu0 0.0
        %350 = vmatpush1.msra.mxu0 0.0
        %351 = vmatprep.subr.mxu0 0.0
        %352 = vmatpush1.msra.mxu0 0.0
        %353 = vmatprep.subr.mxu0 0.0
        %354 = vmatpush1.msra.mxu0 0.0
        %355 = vmatprep.subr.mxu0 0.0
        %356 = vmatpush1.msra.mxu0 0.0
        %357 = vmatprep.subr.mxu0 0.0
        %358 = vmatpush1.msra.mxu0 0.0
        %359 = vmatprep.subr.mxu0 0.0
        %360 = vmatpush1.msra.mxu0 0.0
        %361 = vmatprep.subr.mxu0 0.0
        %362 = vmatpush1.msra.mxu0 0.0
        %363 = vmatprep.subr.mxu0 0.0
        %364 = vmatpush1.msra.mxu0 0.0
        %365 = vmatprep.subr.mxu0 0.0
        %366 = vmatpush1.msra.mxu0 0.0
        %367 = vmatprep.subr.mxu0 0.0
        %368 = vmatpush1.msra.mxu0 0.0
        %369 = vmatprep.subr.mxu0 0.0
        %370 = vmatpush1.msra.mxu0 0.0
        %371 = vmatprep.subr.mxu0 0.0
        %372 = vmatpush1.msra.mxu0 0.0
        %373 = vmatprep.subr.mxu0 0.0
        %374 = vmatpush1.msra.mxu0 0.0
        %375 = vmatprep.subr.mxu0 0.0
        %376 = vmatpush1.msra.mxu0 0.0
        %377 = vmatprep.subr.mxu0 0.0
        %378 = vmatpush1.msra.mxu0 0.0
        %379 = vmatprep.subr.mxu0 0.0
        %380 = vmatpush1.msra.mxu0 0.0
        %381 = vmatprep.subr.mxu0 0.0
        %382 = vmatpush1.msra.mxu0 0.0
        %383 = vmatprep.subr.mxu0 0.0
        %384 = vmatpush1.msra.mxu0 0.0
        %385 = vmatprep.subr.mxu0 0.0
        %386 = vmatpush1.msra.mxu0 0.0
        %387 = vmatprep.subr.mxu0 0.0
        %388 = vmatpush1.msra.mxu0 0.0
        %389 = vmatprep.subr.mxu0 0.0
        %390 = vmatpush1.msra.mxu0 0.0
        %391 = vmatprep.subr.mxu0 0.0
        %392 = vmatpush1.msra.mxu0 0.0
        %393 = vmatprep.mubr.f32.mxu0 0.0
        %394 = vmatmul.mubr.f32.gmra.mrb[0].mxu0 %v324
        %v395 = vpop.f32.mrb[0].mxu0
        %v396 = vadd.f32 0.0, %v395
        %v397 = vpop.f32.mrb[0].mxu0
        %398 = vmatprep.mubr.f32.mxu0 0.0
        %399 = vmatmul.mubr.f32.gmra.mrb[0].mxu0 %v327
        %v400 = vpop.f32.mrb[0].mxu0
        %v401 = vadd.f32 0.0, %v400
        %v402 = vpop.f32.mrb[0].mxu0
        %403 = vdwg.mxu0
        %v404 = vadd.f32 %v314, %v396
        %v405 = vadd.f32 %v315, %v401
        %406 = vst [vmem:[#allocation2] sm:$0xff] %v404
        %407 = vst [vmem:[#allocation2 + $0x8] sm:$0xff] %v405
        // Predicated region
        $region45: #{tpu_custom_call.1} parent=31 // pred_check
          %p408 = pneg %p301
        $region46: #{tpu_custom_call.1} parent=31 // pred_check_branch
          %410 = sbr.rel (%p408) target = $region48
        $region47: #{tpu_custom_call.1} parent=31 // pred_region
          %v411 = vld [vmem:[#allocation2] sm:$0xff]
          %v412 = vld [vmem:[#allocation2 + $0x8] sm:$0xff]
          %413 = vst [vmem:[%s291] sm:$0xff] %v411
          %414 = vst [vmem:[%s291 + $0x8] sm:$0xff] %v412
        $region48: #{tpu_custom_call.1} parent=31 // pred_fallthru
          _
        %s415 = sand.u32 %s149, 1
        %s416 = scalar_lea.sflag [#allocation5], %s415
        %s417 = sand.u32 %s149, 1
        %s418 = smul.addr %s417, 16
        %s419 = scalar_lea.vmem [#allocation8], %s418
        // Predicated region
        $region49: #{tpu_custom_call.1} parent=31 // pred_check
          %p420 = pneg %p159
        $region50: #{tpu_custom_call.1} parent=31 // pred_check_branch
          %422 = sbr.rel (%p420) target = $region52
        $region51: #{tpu_custom_call.1} parent=31 // pred_region
          %s423 = smul.u32 2, %s30
          %s425 = ssub.s32 256, 256
          %426 = vsyncadd %s416, %s425
          %s427 = sadd.s32 %s31, %s423
          %s428 = smul.addr %s29, 2
          %s429 = sadd.s32 %s427, %s428
          %s430 = smul.addr %s429, 128
          %s431 = scalar_lea.hbm %s3, %s430
          %s432 = sshll.u32 %s419, 4
          %s433 = int_to_ptr.vmem [resolvable:$true] %s432
          %438 = dma.vmem_to_hbm [thread:$0]  %s433, 256, %s431, %s416, 128, 128, 8
        $region52: #{tpu_custom_call.1} parent=31 // pred_fallthru
          _
      $region32: #{tpu_custom_call.1} parent=5 // pred_fallthru
        _
      %p439 = scmp.le.s32.totalorder 2, %s18
      // Predicated region
      $region53: #{tpu_custom_call.1} parent=5 // pred_check
        %p440 = pneg %p439
      $region54: #{tpu_custom_call.1} parent=5 // pred_check_branch
        %442 = sbr.rel (%p440) target = $region56
      $region55: #{tpu_custom_call.1} parent=5 // pred_region
        %s443 = ssub.s32 %s18, 2
        // Predicated region
        $region57: #{tpu_custom_call.1} parent=55 // pred_check
          %p444 = pneg %p165
        $region58: #{tpu_custom_call.1} parent=55 // pred_check_branch
          %446 = sbr.rel (%p444) target = $region60
        $region59: #{tpu_custom_call.1} parent=55 // pred_region
          %s447 = sand.u32 %s150, 1
          %s448 = scalar_lea.sflag [#allocation5], %s447
          %s449 = sand.u32 %s150, 1
          %s450 = smul.addr %s449, 16
          %s451 = scalar_lea.vmem [#allocation8], %s450
          %452 = dma.done %s448, 256
        $region60: #{tpu_custom_call.1} parent=55 // pred_fallthru
          _
      $region56: #{tpu_custom_call.1} parent=5 // pred_fallthru
        _
    $region6: #{tpu_custom_call.1} parent=1 // loop_footer
      %s22 = sadd.s32 1, %s18
    $region7: #{tpu_custom_call.1} parent=1 // loop_footer_branch
      %17 = sbr.rel target = $region3
    $region8: #{tpu_custom_call.1} parent=1 // loop_exit
      _
    %453 = vsyncpa [#allocation4], 1
    %s454 = scalar_lea.sflag [#allocation4], 1
    %455 = vsyncpa %s454, 1
    %456 = vsyncpa [#allocation7], 1
    %s457 = scalar_lea.sflag [#allocation7], 1
    %458 = vsyncpa %s457, 1
    %459 = vsyncpa [#allocation5], 1
    %s460 = scalar_lea.sflag [#allocation5], 1
    %461 = vsyncpa %s460, 1

</llo_original>
